<compile_context>
chip_gen: v5e
topology: v5e:2x2
jax: 0.10.0
libtpu: 0.0.40
codegen_flags: <defaults>
</compile_context>

<pallas_src>
import math

import jax
import jax.numpy as jnp
from jax import lax
from jax.experimental import pallas as pl
from jax.experimental.pallas import tpu as pltpu


def _round_up(a: int, b: int) -> int:
    return (a + b - 1) // b * b


def _choose_tm(d_in: int, h: int, d_out_p: int,
               *, dtype_bytes: int = 4,
               budget_bytes: int = 12 * 1024 * 1024,
               tm_cap: int = 1024) -> int:
    """Largest row-tile that keeps double-buffered tiles + resident weights
    comfortably inside the scoped-VMEM budget on all TPU generations."""
    resident = dtype_bytes * (d_in * h + h + h * d_out_p + d_out_p)
    # per-row: double-buffered x tile + double-buffered out tile
    #          + live f32 intermediate (h) and f32 accumulator (d_out_p)
    per_row = dtype_bytes * (2 * d_in + 2 * d_out_p) + 4 * (h + d_out_p)
    avail = max(budget_bytes - 2 * resident, per_row * 8)
    tm = max(8, min(tm_cap, avail // per_row))
    if tm >= 128:
        tm = (tm // 128) * 128        # MXU/lane friendly
    else:
        tm = (tm // 8) * 8            # sublane aligned
    return int(tm)


def _nonlinear_kernel(x_ref, w1_ref, b1_ref, w2_ref, b2_ref, o_ref):
    # layer1: x @ W1 + b1   (MXU matmul, f32 accumulate)
    h = jnp.dot(x_ref[...], w1_ref[...], preferred_element_type=jnp.float32)
    h = h + b1_ref[...]  # b1 is (1, H) -> broadcasts over rows

    # exact GELU (matches torch.nn.functional.gelu default, erf-based; EUP op)
    h = 0.5 * h * (1.0 + lax.erf(h * (1.0 / math.sqrt(2.0))))

    # layer2: h @ W2 + b2
    y = jnp.dot(h.astype(w2_ref.dtype), w2_ref[...],
                preferred_element_type=jnp.float32)
    y = y + b2_ref[...]
    o_ref[...] = y.astype(o_ref.dtype)


def nonlinear_forward(x, w1, b1, w2, b2):
    """x: [..., D_in]; w1: (D_in, H); b1: (H,); w2: (H, D_out); b2: (D_out,)."""
    *lead, d_in = x.shape
    m = 1
    for s in lead:
        m *= s
    h = w1.shape[1]
    d_out = w2.shape[1]

    x2d = x.reshape(m, d_in)

    # --- lane-dense output: pad D_out up to a multiple of 128 -----------------
    d_out_p = _round_up(d_out, 128)
    if d_out_p != d_out:
        w2p = jnp.pad(w2, ((0, 0), (0, d_out_p - d_out)))   # zero columns
        b2p = jnp.pad(b2, (0, d_out_p - d_out))              # zero bias entries
    else:
        w2p, b2p = w2, b2

    # --- tile the M (row) axis -------------------------------------------------
    tm = min(_choose_tm(d_in, h, d_out_p), _round_up(m, 8))
    m_p = _round_up(m, tm)               # pad rows so the grid divides evenly
    if m_p != m:
        x2d = jnp.pad(x2d, ((0, m_p - m), (0, 0)))
    grid = (m_p // tm,)

    # --- cost hint for the XLA scheduler --------------------------------------
    flops = 2 * m_p * (d_in * h + h * d_out_p)
    bytes_accessed = 4 * (m_p * d_in + d_in * h + h
                          + h * d_out_p + d_out_p + m_p * d_out_p)
    cost = pl.CostEstimate(flops=flops,
                           transcendentals=m_p * h,
                           bytes_accessed=bytes_accessed)

    out2d = pl.pallas_call(
        _nonlinear_kernel,
        out_shape=jax.ShapeDtypeStruct((m_p, d_out_p), x.dtype),
        grid_spec=pltpu.PrefetchScalarGridSpec(
            num_scalar_prefetch=0,
            grid=grid,
            in_specs=[
                pl.BlockSpec((tm, d_in), lambda i: (i, 0)),       # streamed x tiles
                pl.BlockSpec((d_in, h), lambda i: (0, 0)),        # resident W1
                pl.BlockSpec((1, h), lambda i: (0, 0)),           # resident b1
                pl.BlockSpec((h, d_out_p), lambda i: (0, 0)),     # resident W2 (padded)
                pl.BlockSpec((1, d_out_p), lambda i: (0, 0)),     # resident b2 (padded)
            ],
            out_specs=pl.BlockSpec((tm, d_out_p), lambda i: (i, 0)),
        ),
        compiler_params=pltpu.CompilerParams(
            dimension_semantics=("parallel",),   # M tiles are independent -> megacore
        ),
        cost_estimate=cost,
    )(x2d, w1, b1.reshape(1, h), w2p, b2p.reshape(1, d_out_p))

    # slice off row padding and the padded output lanes
    out = out2d[:m, :d_out]
    return out.reshape(*lead, d_out)


if __name__ == "__main__":
    # Small shapes consistent with the module: batch=2, seq=8, input=32,
    # hidden=32 (default hidden=input), output_size=16.
    B, N, D_IN, HID, D_OUT = 2, 8, 32, 32, 16

    key = jax.random.PRNGKey(0)
    k_x, k_w1, k_b1, k_w2, k_b2 = jax.random.split(key, 5)

    x = jax.random.normal(k_x, (B, N, D_IN), dtype=jnp.float32)

    # Deterministic parameter init (mimics nn.Linear uniform(-1/sqrt(fan_in), 1/sqrt(fan_in))).
    lim1 = 1.0 / math.sqrt(D_IN)
    w1 = jax.random.uniform(k_w1, (D_IN, HID), minval=-lim1, maxval=lim1, dtype=jnp.float32)
    b1 = jax.random.uniform(k_b1, (HID,), minval=-lim1, maxval=lim1, dtype=jnp.float32)
    lim2 = 1.0 / math.sqrt(HID)
    w2 = jax.random.uniform(k_w2, (HID, D_OUT), minval=-lim2, maxval=lim2, dtype=jnp.float32)
    b2 = jax.random.uniform(k_b2, (D_OUT,), minval=-lim2, maxval=lim2, dtype=jnp.float32)

    out = nonlinear_forward(x, w1, b1, w2, b2)
    out = jax.block_until_ready(out)

    # Reference check in plain JAX (exact erf gelu).
    ref_h = x.reshape(-1, D_IN) @ w1 + b1
    ref_h = 0.5 * ref_h * (1.0 + lax.erf(ref_h / math.sqrt(2.0)))
    ref = (ref_h @ w2 + b2).reshape(B, N, D_OUT)
    assert out.shape == (B, N, D_OUT)
    assert jnp.allclose(out, ref, atol=1e-5, rtol=1e-5)

    print("KERNEL_OK")
</pallas_src>

<mosaic_0001>
module attributes {stable_mosaic.version = 11 : i64} {
  func.func @_nonlinear_kernel(%arg0: i32, %arg1: memref<16x32xf32, #tpu.memory_space<vmem>>, %arg2: memref<32x32xf32, #tpu.memory_space<vmem>>, %arg3: memref<1x32xf32, #tpu.memory_space<vmem>>, %arg4: memref<32x128xf32, #tpu.memory_space<vmem>>, %arg5: memref<1x128xf32, #tpu.memory_space<vmem>>, %arg6: memref<16x128xf32, #tpu.memory_space<vmem>>) attributes {dimension_semantics = [#tpu.dimension_semantics<parallel>], iteration_bounds = array<i64: 1>, scalar_prefetch = 0 : i64, scratch_operands = 0 : i64, tpu.core_type = #tpu.core_type<tc>, window_params = [{transform_indices = @transform_0, window_bounds = array<i64: 16, 32>}, {pipeline_mode = #tpu.pipeline_mode<synchronous>, transform_indices = @transform_1, window_bounds = array<i64: 32, 32>}, {pipeline_mode = #tpu.pipeline_mode<synchronous>, transform_indices = @transform_2, window_bounds = array<i64: 1, 32>}, {pipeline_mode = #tpu.pipeline_mode<synchronous>, transform_indices = @transform_3, window_bounds = array<i64: 32, 128>}, {pipeline_mode = #tpu.pipeline_mode<synchronous>, transform_indices = @transform_4, window_bounds = array<i64: 1, 128>}, {transform_indices = @transform_5, window_bounds = array<i64: 16, 128>}]} {
    %c0 = arith.constant 0 : index
    %c0_0 = arith.constant 0 : index
    %0 = vector.load %arg1[%c0, %c0_0] : memref<16x32xf32, #tpu.memory_space<vmem>>, vector<16x32xf32>
    %c0_1 = arith.constant 0 : index
    %c0_2 = arith.constant 0 : index
    %1 = vector.load %arg2[%c0_1, %c0_2] : memref<32x32xf32, #tpu.memory_space<vmem>>, vector<32x32xf32>
    %cst = arith.constant dense<0.000000e+00> : vector<16x32xf32>
    %2 = tpu.matmul %0, %1, %cst {dimension_numbers = #tpu.dot_dimension_numbers<[1], [0], [0], [1], [0, 0, 1, 1], [], []>} : vector<16x32xf32>, vector<32x32xf32>, vector<16x32xf32> -> vector<16x32xf32>
    %c0_3 = arith.constant 0 : index
    %c0_4 = arith.constant 0 : index
    %3 = vector.load %arg3[%c0_3, %c0_4] : memref<1x32xf32, #tpu.memory_space<vmem>>, vector<1x32xf32>
    %4 = vector.broadcast %3 : vector<1x32xf32> to vector<16x32xf32>
    %5 = arith.addf %2, %4 : vector<16x32xf32>
    %cst_5 = arith.constant 5.000000e-01 : f32
    %6 = vector.broadcast %cst_5 : f32 to vector<16x32xf32>
    %7 = arith.mulf %6, %5 : vector<16x32xf32>
    %cst_6 = arith.constant 0.707106769 : f32
    %8 = vector.broadcast %cst_6 : f32 to vector<16x32xf32>
    %9 = arith.mulf %5, %8 : vector<16x32xf32>
    %10 = math.erf %9 : vector<16x32xf32>
    %cst_7 = arith.constant 1.000000e+00 : f32
    %11 = vector.broadcast %cst_7 : f32 to vector<16x32xf32>
    %12 = arith.addf %11, %10 : vector<16x32xf32>
    %13 = arith.mulf %7, %12 : vector<16x32xf32>
    %c0_8 = arith.constant 0 : index
    %c0_9 = arith.constant 0 : index
    %14 = vector.load %arg4[%c0_8, %c0_9] : memref<32x128xf32, #tpu.memory_space<vmem>>, vector<32x128xf32>
    %cst_10 = arith.constant dense<0.000000e+00> : vector<16x128xf32>
    %15 = tpu.matmul %13, %14, %cst_10 {dimension_numbers = #tpu.dot_dimension_numbers<[1], [0], [0], [1], [0, 0, 1, 1], [], []>} : vector<16x32xf32>, vector<32x128xf32>, vector<16x128xf32> -> vector<16x128xf32>
    %c0_11 = arith.constant 0 : index
    %c0_12 = arith.constant 0 : index
    %16 = vector.load %arg5[%c0_11, %c0_12] : memref<1x128xf32, #tpu.memory_space<vmem>>, vector<1x128xf32>
    %17 = vector.broadcast %16 : vector<1x128xf32> to vector<16x128xf32>
    %18 = arith.addf %15, %17 : vector<16x128xf32>
    %c0_13 = arith.constant 0 : index
    %c0_14 = arith.constant 0 : index
    %19 = vector.load %arg6[%c0_13, %c0_14] : memref<16x128xf32, #tpu.memory_space<vmem>>, vector<16x128xf32>
    tpu.vector_store %arg6[%c0_13, %c0_14], %18 {strides = array<i32>} : memref<16x128xf32, #tpu.memory_space<vmem>>, vector<16x128xf32>,
    return
  }
  func.func @transform_0(%arg0: i32) -> (i32, i32) {
    %c0_i32 = arith.constant 0 : i32
    %c0_i32_0 = arith.constant 0 : i32
    return %arg0, %c0_i32 : i32, i32
  }
  func.func @transform_1(%arg0: i32) -> (i32, i32) {
    %c0_i32 = arith.constant 0 : i32
    %c0_i32_0 = arith.constant 0 : i32
    %c0_i32_1 = arith.constant 0 : i32
    return %c0_i32, %c0_i32_0 : i32, i32
  }
  func.func @transform_2(%arg0: i32) -> (i32, i32) {
    %c0_i32 = arith.constant 0 : i32
    %c0_i32_0 = arith.constant 0 : i32
    %c0_i32_1 = arith.constant 0 : i32
    return %c0_i32, %c0_i32_0 : i32, i32
  }
  func.func @transform_3(%arg0: i32) -> (i32, i32) {
    %c0_i32 = arith.constant 0 : i32
    %c0_i32_0 = arith.constant 0 : i32
    %c0_i32_1 = arith.constant 0 : i32
    return %c0_i32, %c0_i32_0 : i32, i32
  }
  func.func @transform_4(%arg0: i32) -> (i32, i32) {
    %c0_i32 = arith.constant 0 : i32
    %c0_i32_0 = arith.constant 0 : i32
    %c0_i32_1 = arith.constant 0 : i32
    return %c0_i32, %c0_i32_0 : i32, i32
  }
  func.func @transform_5(%arg0: i32) -> (i32, i32) {
    %c0_i32 = arith.constant 0 : i32
    %c0_i32_0 = arith.constant 0 : i32
    return %arg0, %c0_i32 : i32, i32
  }
}

</mosaic_0001>

<llo_original>
// kernel: tpu_custom_call.1
$region0: #{tpu_custom_call.1}
  #allocation0 [shape = 'u32[]', space=smem, size = 0x4, offset = 0x4, fixed_abs, tag = 'smem constant byte address 0x4 - core index']
  #allocation1 [shape = 'u32[72,128]{1,0:T(1,128)}', space=vmem, size = 0x9000, scoped, tag = 'internal scratch']
  %s0 = inlined_call_operand.hbm [shape: f32[16,32], index: 0, kind: input, shape index: {}]
  %s1 = inlined_call_operand.hbm [shape: f32[32,32], index: 1, kind: input, shape index: {}]
  %s2 = inlined_call_operand.vmem [shape: f32[1,32], index: 2, kind: input, shape index: {}]
  %s3 = inlined_call_operand.hbm [shape: f32[32,128], index: 3, kind: input, shape index: {}]
  %s4 = inlined_call_operand.vmem [shape: f32[1,128], index: 4, kind: input, shape index: {}]
  %s5 = inlined_call_operand.hbm [shape: f32[16,128], index: 5, kind: output, shape index: {}]
  %s6 = sld [smem:[#allocation0]]
  $region42: #{tpu_custom_call.1} parent=0
    _
  %s8 = ssub.s32 1, %s6
  %s9 = scalar_select 0, %s8, %s6
  $region1: #{tpu_custom_call.1} parent=0
    #allocation2 [shape = 'u8[8192]{0}', space=vmem, size = 0x2000, scoped, tag = 'input window, operand 0, single buffered']
    #allocation3 [shape = 's32[1]{0}', space=sflag, size = 0x4, scoped, tag = 'scoped memory for tpu_custom_call.1']
    #allocation4 [shape = 's32[1]{0}', space=sflag, size = 0x4, scoped, tag = 'scoped memory for tpu_custom_call.1']
    #allocation5 [shape = 'u8[16384]{0}', space=vmem, size = 0x4000, scoped, tag = 'input window, operand 1, single buffered']
    #allocation6 [shape = 's32[1]{0}', space=sflag, size = 0x4, scoped, tag = 'scoped memory for tpu_custom_call.1']
    #allocation7 [shape = 'u8[16384]{0}', space=vmem, size = 0x4000, scoped, tag = 'input window, operand 3, single buffered']
    #allocation8 [shape = 'u8[8192]{0}', space=vmem, size = 0x2000, scoped, tag = 'output window, operand 0, single buffered']
    %10 = vsyncpa [#allocation3], 0
    %11 = vsyncpa [#allocation6], 0
    %12 = vsyncpa [#allocation4], 0
    // Predicated region
    $region2: #{tpu_custom_call.1} parent=1 // pred_check
      _
    $region3: #{tpu_custom_call.1} parent=1 // pred_check_branch
      %14 = sbr.rel (0) target = $region5
    $region4: #{tpu_custom_call.1} parent=1 // pred_region
      %16 = vsyncadd [#allocation3], 0
      %s17 = sshll.u32 %s0, 4
      %s18 = int_to_ptr.hbm [resolvable:$true] %s17
      %s19 = sshll.u32 [#allocation2], 4
      %s20 = int_to_ptr.vmem [resolvable:$true] %s19
      %25 = dma.hbm_to_vmem [thread:$0]  %s18, 256, %s20, [#allocation3], 128, 128, 8
    $region5: #{tpu_custom_call.1} parent=1 // pred_fallthru
      _
    // Predicated region
    $region6: #{tpu_custom_call.1} parent=1 // pred_check
      _
    $region7: #{tpu_custom_call.1} parent=1 // pred_check_branch
      %27 = sbr.rel (0) target = $region9
    $region8: #{tpu_custom_call.1} parent=1 // pred_region
      %29 = vsyncadd [#allocation6], 0
      %s30 = sshll.u32 %s1, 4
      %s31 = int_to_ptr.hbm [resolvable:$true] %s30
      %s32 = sshll.u32 [#allocation5], 4
      %s33 = int_to_ptr.vmem [resolvable:$true] %s32
      %38 = dma.hbm_to_vmem [thread:$0]  %s31, 512, %s33, [#allocation6], 128, 128, 8
    $region9: #{tpu_custom_call.1} parent=1 // pred_fallthru
      _
    // Predicated region
    $region10: #{tpu_custom_call.1} parent=1 // pred_check
      _
    $region11: #{tpu_custom_call.1} parent=1 // pred_check_branch
      %40 = sbr.rel (0) target = $region13
    $region12: #{tpu_custom_call.1} parent=1 // pred_region
      _
    $region13: #{tpu_custom_call.1} parent=1 // pred_fallthru
      _
    // Predicated region
    $region14: #{tpu_custom_call.1} parent=1 // pred_check
      _
    $region15: #{tpu_custom_call.1} parent=1 // pred_check_branch
      %42 = sbr.rel (0) target = $region17
    $region16: #{tpu_custom_call.1} parent=1 // pred_region
      %44 = vsyncadd [#allocation6], 0
      %s45 = sshll.u32 %s3, 4
      %s46 = int_to_ptr.hbm [resolvable:$true] %s45
      %s47 = sshll.u32 [#allocation7], 4
      %s48 = int_to_ptr.vmem [resolvable:$true] %s47
      %53 = dma.hbm_to_vmem [thread:$0]  %s46, 512, %s48, [#allocation6], 128, 128, 8
    $region17: #{tpu_custom_call.1} parent=1 // pred_fallthru
      _
    // Predicated region
    $region18: #{tpu_custom_call.1} parent=1 // pred_check
      _
    $region19: #{tpu_custom_call.1} parent=1 // pred_check_branch
      %55 = sbr.rel (0) target = $region21
    $region20: #{tpu_custom_call.1} parent=1 // pred_region
      _
    $region21: #{tpu_custom_call.1} parent=1 // pred_fallthru
      _
    // Predicated region
    $region22: #{tpu_custom_call.1} parent=1 // pred_check
      _
    $region23: #{tpu_custom_call.1} parent=1 // pred_check_branch
      %57 = sbr.rel (0) target = $region25
    $region24: #{tpu_custom_call.1} parent=1 // pred_region
      %59 = dma.done [#allocation3], 256
    $region25: #{tpu_custom_call.1} parent=1 // pred_fallthru
      _
    // Predicated region
    $region26: #{tpu_custom_call.1} parent=1 // pred_check
      _
    $region27: #{tpu_custom_call.1} parent=1 // pred_check_branch
      %61 = sbr.rel (0) target = $region29
    $region28: #{tpu_custom_call.1} parent=1 // pred_region
      %63 = dma.done [#allocation6], 512
    $region29: #{tpu_custom_call.1} parent=1 // pred_fallthru
      _
    // Predicated region
    $region30: #{tpu_custom_call.1} parent=1 // pred_check
      _
    $region31: #{tpu_custom_call.1} parent=1 // pred_check_branch
      %65 = sbr.rel (0) target = $region33
    $region32: #{tpu_custom_call.1} parent=1 // pred_region
      %67 = dma.done [#allocation6], 512
    $region33: #{tpu_custom_call.1} parent=1 // pred_fallthru
      _
    %v68 = vld [vmem:[#allocation2] sm:$0xff]
    %v69 = vld [vmem:[#allocation2 + $0x8] sm:$0xff]
    %v70 = vld [vmem:[#allocation5] sm:$0xff]
    %v71 = vld [vmem:[#allocation5 + $0x8] sm:$0xff]
    %v72 = vld [vmem:[#allocation5 + $0x10] sm:$0xff]
    %v73 = vld [vmem:[#allocation5 + $0x18] sm:$0xff]
    %v74 = vld [vmem:[%s2] sm:$0x1]
    %v76 = vperm.slane %v74, 0
    %vm78 = vcmask 261120
    %v80 = vsel %vm78, %v68, 0
    %v83 = vsel %vm78, %v69, 0
    %85 = vmatpush.msra.mxu0 0.0
    %86 = vmatpush.msra.mxu0 0.0
    %87 = vmatpush.msra.mxu0 0.0
    %88 = vmatpush.msra.mxu0 0.0
    %89 = vmatpush.msra.mxu0 0.0
    %90 = vmatpush.msra.mxu0 0.0
    %91 = vmatpush.msra.mxu0 0.0
    %92 = vmatpush.msra.mxu0 0.0
    %93 = vmatpush.msra.mxu0 0.0
    %94 = vmatpush.msra.mxu0 0.0
    %95 = vmatpush.msra.mxu0 0.0
    %96 = vmatpush.msra.mxu0 0.0
    %97 = vmatpush.msra.mxu0 %v73
    %98 = vmatpush.msra.mxu0 %v72
    %99 = vmatpush.msra.mxu0 %v71
    %100 = vmatpush.msra.mxu0 %v70
    %101 = vmatmul.f32.gmra.mxu0 %v80
    %v102 = vpop.f32.mrf.mxu0
    %v103 = vadd.f32 %v76, %v102
    %104 = vmatmul.f32.gmra.mxu0 %v83
    %v105 = vpop.f32.mrf.mxu0
    %v106 = vadd.f32 %v76, %v105
    %107 = vdwg.mxu0
    %v108 = vmul.f32 %v103, 0.5
    %v109 = vmul.f32 %v106, 0.5
    %v110 = vmul.f32 %v103, 0.70710677
    %v111 = vmul.f32 %v106, 0.70710677
    %v112 = vmul.f32 %v110, %v110
    %v113 = vmin.f32 16.0, %v112
    %v114 = vmul.f32 %v113, 2.1237322e-06
    %v115 = vadd.f32 %v114, 0.00028619796
    %v116 = vmul.f32 %v113, %v115
    %v117 = vadd.f32 %v116, 0.0036580483
    %v118 = vmul.f32 %v113, %v117
    %v119 = vadd.f32 %v118, 0.05243302
    %v120 = vmul.f32 %v113, %v119
    %v121 = vadd.f32 %v120, 0.18741608
    %v122 = vmul.f32 %v113, %v121
    %v123 = vadd.f32 %v122, 1.1283791
    %v124 = vmul.f32 %v110, %v123
    %v125 = vmul.f32 %v113, 3.8918573e-05
    %v126 = vadd.f32 %v125, 0.001143296
    %v127 = vmul.f32 %v113, %v126
    %v128 = vadd.f32 %v127, 0.014752088
    %v129 = vmul.f32 %v113, %v128
    %v130 = vadd.f32 %v129, 0.112945676
    %v131 = vmul.f32 %v113, %v130
    %v132 = vadd.f32 %v131, 0.4994258
    %v133 = vmul.f32 %v113, %v132
    %v134 = vadd.f32 %v133, 1.0
    %v135 = vrcp.pop %v134
    %v136 = vmul.f32 %v134, %v135
    %v137 = vsub.f32 1.0, %v136
    %v138 = vmul.f32 %v135, %v137
    %v139 = vadd.f32 %v135, %v138
    %vm140 = vweird.f32 %v134
    %vm141 = vweird.f32 %v135
    %vm142 = vmor %vm140, %vm141
    %v143 = vsel %vm142, %v135, %v139
    %v144 = vand.u32 2147483647, %v134
    %vm145 = vcmp.eq.f32.partialorder %v144, 8.507059e+37
    %v146 = vand.u32 %v134, 2147483648
    %v147 = vor.u32 1.1754944e-38, %v146
    %v148 = vsel %vm145, %v147, %v143
    %v149 = vmul.f32 %v124, %v148
    %v150 = vmin.f32 %v149, 1.0
    %v151 = vmax.f32 %v150, -1.0
    %v152 = vmul.f32 %v111, %v111
    %v153 = vmin.f32 16.0, %v152
    %v154 = vmul.f32 %v153, 2.1237322e-06
    %v155 = vadd.f32 %v154, 0.00028619796
    %v156 = vmul.f32 %v153, %v155
    %v157 = vadd.f32 %v156, 0.0036580483
    %v158 = vmul.f32 %v153, %v157
    %v159 = vadd.f32 %v158, 0.05243302
    %v160 = vmul.f32 %v153, %v159
    %v161 = vadd.f32 %v160, 0.18741608
    %v162 = vmul.f32 %v153, %v161
    %v163 = vadd.f32 %v162, 1.1283791
    %v164 = vmul.f32 %v111, %v163
    %v165 = vmul.f32 %v153, 3.8918573e-05
    %v166 = vadd.f32 %v165, 0.001143296
    %v167 = vmul.f32 %v153, %v166
    %v168 = vadd.f32 %v167, 0.014752088
    %v169 = vmul.f32 %v153, %v168
    %v170 = vadd.f32 %v169, 0.112945676
    %v171 = vmul.f32 %v153, %v170
    %v172 = vadd.f32 %v171, 0.4994258
    %v173 = vmul.f32 %v153, %v172
    %v174 = vadd.f32 %v173, 1.0
    %v175 = vrcp.pop %v174
    %v176 = vmul.f32 %v174, %v175
    %v177 = vsub.f32 1.0, %v176
    %v178 = vmul.f32 %v175, %v177
    %v179 = vadd.f32 %v175, %v178
    %vm180 = vweird.f32 %v174
    %vm181 = vweird.f32 %v175
    %vm182 = vmor %vm180, %vm181
    %v183 = vsel %vm182, %v175, %v179
    %v184 = vand.u32 2147483647, %v174
    %vm185 = vcmp.eq.f32.partialorder %v184, 8.507059e+37
    %v186 = vand.u32 %v174, 2147483648
    %v187 = vor.u32 1.1754944e-38, %v186
    %v188 = vsel %vm185, %v187, %v183
    %v189 = vmul.f32 %v164, %v188
    %v190 = vmin.f32 %v189, 1.0
    %v191 = vmax.f32 %v190, -1.0
    %v192 = vadd.f32 %v151, 1.0
    %v193 = vadd.f32 %v191, 1.0
    %v194 = vmul.f32 %v108, %v192
    %v195 = vmul.f32 %v109, %v193
    %v196 = vld [vmem:[#allocation7] sm:$0xff]
    %v197 = vld [vmem:[#allocation7 + $0x8] sm:$0xff]
    %v198 = vld [vmem:[#allocation7 + $0x10] sm:$0xff]
    %v199 = vld [vmem:[#allocation7 + $0x18] sm:$0xff]
    %v200 = vld [vmem:[%s4] sm:$0x1]
    %v202 = vperm.slane %v200, 0
    %v205 = vsel %vm78, %v194, 0
    %v208 = vsel %vm78, %v195, 0
    %210 = vmatpush.msra.mxu0 0.0
    %211 = vmatpush.msra.mxu0 0.0
    %212 = vmatpush.msra.mxu0 0.0
    %213 = vmatpush.msra.mxu0 0.0
    %214 = vmatpush.msra.mxu0 0.0
    %215 = vmatpush.msra.mxu0 0.0
    %216 = vmatpush.msra.mxu0 0.0
    %217 = vmatpush.msra.mxu0 0.0
    %218 = vmatpush.msra.mxu0 0.0
    %219 = vmatpush.msra.mxu0 0.0
    %220 = vmatpush.msra.mxu0 0.0
    %221 = vmatpush.msra.mxu0 0.0
    %222 = vmatpush.msra.mxu0 %v199
    %223 = vmatpush.msra.mxu0 %v198
    %224 = vmatpush.msra.mxu0 %v197
    %225 = vmatpush.msra.mxu0 %v196
    %226 = vmatmul.f32.gmra.mxu0 %v205
    %v227 = vpop.f32.mrf.mxu0
    %v228 = vadd.f32 %v202, %v227
    %229 = vmatmul.f32.gmra.mxu0 %v208
    %v230 = vpop.f32.mrf.mxu0
    %v231 = vadd.f32 %v202, %v230
    %232 = vdwg.mxu0
    %233 = vst [vmem:[#allocation8] sm:$0xff] %v228
    %234 = vst [vmem:[#allocation8 + $0x8] sm:$0xff] %v231
    // Predicated region
    $region34: #{tpu_custom_call.1} parent=1 // pred_check
      _
    $region35: #{tpu_custom_call.1} parent=1 // pred_check_branch
      %236 = sbr.rel (0) target = $region37
    $region36: #{tpu_custom_call.1} parent=1 // pred_region
      %238 = vsyncadd [#allocation4], 0
      %s239 = sshll.u32 [#allocation8], 4
      %s240 = int_to_ptr.vmem [resolvable:$true] %s239
      %s241 = sshll.u32 %s5, 4
      %s242 = int_to_ptr.hbm [resolvable:$true] %s241
      %247 = dma.vmem_to_hbm [thread:$0]  %s240, 256, %s242, [#allocation4], 128, 128, 8
    $region37: #{tpu_custom_call.1} parent=1 // pred_fallthru
      _
    // Predicated region
    $region38: #{tpu_custom_call.1} parent=1 // pred_check
      _
    $region39: #{tpu_custom_call.1} parent=1 // pred_check_branch
      %249 = sbr.rel (0) target = $region41
    $region40: #{tpu_custom_call.1} parent=1 // pred_region
      %251 = dma.done [#allocation4], 256
    $region41: #{tpu_custom_call.1} parent=1 // pred_fallthru
      _
    %252 = vsyncpa [#allocation3], 1
    %253 = vsyncpa [#allocation6], 1
    %254 = vsyncpa [#allocation4], 1

</llo_original>
